<compile_context>
chip_gen: v7x
topology: tpu7x:2x2x1
jax: 0.10.0
libtpu: 0.0.40
codegen_flags: <defaults>
</compile_context>

<pallas_src>
import functools

import numpy as np
import jax
import jax.numpy as jnp
from jax.experimental import pallas as pl
from jax.experimental.pallas import tpu as pltpu

LANES = 128


def _round_up(x, m):
    return (x + m - 1) // m * m


# ----------------------------------------------------------------------------
# Host-side setup (mirrors TpsGridGen.__init__ / compute_L_inverse, float32)
# ----------------------------------------------------------------------------
def make_tps_constants(out_h, out_w, grid_size):
    grid_X, grid_Y = np.meshgrid(
        np.linspace(-1.0, 1.0, out_w), np.linspace(-1.0, 1.0, out_h)
    )
    grid_X = grid_X.astype(np.float32)  # (H, W): pixel x coordinate
    grid_Y = grid_Y.astype(np.float32)  # (H, W): pixel y coordinate

    axis_coords = np.linspace(-1.0, 1.0, grid_size)
    P_Y, P_X = np.meshgrid(axis_coords, axis_coords)
    P_X = np.reshape(P_X, (-1,)).astype(np.float32)  # (N,)
    P_Y = np.reshape(P_Y, (-1,)).astype(np.float32)  # (N,)
    N = grid_size * grid_size

    # compute_L_inverse (reg_factor == 0); the d2==0 -> 1 clamp exists only here.
    Xmat = np.tile(P_X[:, None], (1, N))
    Ymat = np.tile(P_Y[:, None], (1, N))
    P_dist_squared = (Xmat - Xmat.T) ** 2 + (Ymat - Ymat.T) ** 2
    P_dist_squared[P_dist_squared == 0.0] = 1.0
    K = P_dist_squared * np.log(P_dist_squared)
    O = np.ones((N, 1), dtype=np.float32)
    P = np.concatenate([O, P_X[:, None], P_Y[:, None]], axis=1)  # (N, 3)
    L = np.block([[K, P], [P.T, np.zeros((3, 3), dtype=np.float32)]]).astype(np.float32)
    Li = np.linalg.inv(L).astype(np.float32)  # (N+3, N+3)
    return grid_X, grid_Y, P_X, P_Y, Li, N


@functools.lru_cache(maxsize=None)
def _design_matrix(out_h, out_w, grid_size):
    """Fold the constant pixel grid, RBF basis U and Li into M (HW, N) such that
    out_x = theta_x @ M.T and out_y = theta_y @ M.T (theta-independent precompute)."""
    grid_X, grid_Y, P_X, P_Y, Li, N = make_tps_constants(out_h, out_w, grid_size)
    HW = out_h * out_w
    gx = grid_X.reshape(-1).astype(np.float64)
    gy = grid_Y.reshape(-1).astype(np.float64)
    px = P_X.astype(np.float64)
    py = P_Y.astype(np.float64)

    d2 = (gx[:, None] - px[None, :]) ** 2 + (gy[:, None] - py[None, :]) ** 2  # (HW, N)
    with np.errstate(divide="ignore", invalid="ignore"):
        U = d2 * np.log(d2)  # NaN where d2 == 0, faithful to apply_transform

    F = np.concatenate([U, np.ones((HW, 1)), gx[:, None], gy[:, None]], axis=1)  # (HW, N+3)
    M = F @ Li[:, :N].astype(np.float64)  # (HW, N)

    # Pixels coinciding exactly with a control point are NaN for every theta;
    # keep them out of the MXU operand and re-apply NaN after the kernel.
    nan_mask = ~np.isfinite(M).all(axis=1)  # (HW,)
    M = np.where(nan_mask[:, None], 0.0, M).astype(np.float32)
    return M, nan_mask, N


# ----------------------------------------------------------------------------
# Pallas kernel: one MXU matmul per (row_block, lane_block) output tile
# ----------------------------------------------------------------------------
def _tps_matmul_kernel(theta_ref, mt_ref, out_ref):
    # theta_ref: (row_block, K_pad)   x-thetas stacked over y-thetas (zero padded)
    # mt_ref:    (K_pad, lane_block)  constant design matrix, transposed
    # out_ref:   (row_block, lane_block) lane-dense warped-coordinate slab
    out_ref[...] = jax.lax.dot_general(
        theta_ref[...], mt_ref[...],
        dimension_numbers=(((1,), (0,)), ((), ())),
        preferred_element_type=jnp.float32,
        precision=jax.lax.Precision.HIGHEST,
    )


# ----------------------------------------------------------------------------
# Wrapper
# ----------------------------------------------------------------------------
def tps_grid_gen(theta, *, out_h=16, out_w=16, grid_size=3,
                 row_block_max=256, lane_block_max=4096):
    M, nan_mask, N = _design_matrix(out_h, out_w, grid_size)
    B = theta.shape[0]
    assert theta.shape == (B, 2 * N), theta.shape
    HW = out_h * out_w

    # ---- tiling ------------------------------------------------------------
    rows = 2 * B                                    # x planes stacked over y planes
    row_block = min(_round_up(rows, 8), row_block_max)
    rows_pad = _round_up(rows, row_block)
    K_pad = _round_up(N, 8)                         # 9 -> 16 contraction width
    HW_pad = _round_up(HW, LANES)
    lane_block = min(HW_pad, lane_block_max)
    HW_pad = _round_up(HW_pad, lane_block)

    # ---- operands ------------------------------------------------------------
    theta = theta.astype(jnp.float32)
    ts = jnp.concatenate([theta[:, :N], theta[:, N:]], axis=0)      # (2B, N)
    ts = jnp.pad(ts, ((0, rows_pad - rows), (0, K_pad - N)))        # (rows_pad, K_pad)

    mt = np.zeros((K_pad, HW_pad), np.float32)                      # zero pad -> exact
    mt[:N, :HW] = M.T
    mt = jnp.asarray(mt)

    grid = (rows_pad // row_block, HW_pad // lane_block)

    out = pl.pallas_call(
        _tps_matmul_kernel,
        out_shape=jax.ShapeDtypeStruct((rows_pad, HW_pad), jnp.float32),
        grid=grid,
        in_specs=[
            # Theta block: constant along the lane axis -> DMA'd once per row block.
            pl.BlockSpec((row_block, K_pad), lambda i, j: (i, 0)),
            # Design-matrix block: constant along the row axis.
            pl.BlockSpec((K_pad, lane_block), lambda i, j: (0, j)),
        ],
        out_specs=pl.BlockSpec((row_block, lane_block), lambda i, j: (i, j)),
        compiler_params=pltpu.CompilerParams(
            dimension_semantics=("parallel", "parallel")),
    )(ts, mt)

    # ---- layout back to the module's (B, H, W, 2) convention -----------------
    # (kept for fidelity with torch.cat((X', Y'), dim=3); negligible at these sizes)
    X = out[:B, :HW].reshape(B, out_h, out_w)
    Y = out[B:rows, :HW].reshape(B, out_h, out_w)
    res = jnp.stack([X, Y], axis=-1)
    if bool(nan_mask.any()):
        res = jnp.where(jnp.asarray(nan_mask.reshape(1, out_h, out_w, 1)),
                        jnp.float32(np.nan), res)
    return res


# ----------------------------------------------------------------------------
# Pure-JAX reference (mirrors torch apply_transform; sanity check only)
# ----------------------------------------------------------------------------
def tps_grid_gen_ref(theta, *, out_h, out_w, grid_size):
    grid_X, grid_Y, P_X, P_Y, Li, N = make_tps_constants(out_h, out_w, grid_size)
    theta = theta.astype(jnp.float32)
    Li_j = jnp.asarray(Li)
    gx = jnp.asarray(grid_X)
    gy = jnp.asarray(grid_Y)
    px = jnp.asarray(P_X)
    py = jnp.asarray(P_Y)
    hp = jax.lax.Precision.HIGHEST

    tx, ty = theta[:, :N], theta[:, N:]
    wx = jnp.dot(tx, Li_j[:N, :N].T, precision=hp)
    wy = jnp.dot(ty, Li_j[:N, :N].T, precision=hp)
    ax = jnp.dot(tx, Li_j[N:, :N].T, precision=hp)
    ay = jnp.dot(ty, Li_j[N:, :N].T, precision=hp)

    d2 = (gx[None, :, :, None] - px) ** 2 + (gy[None, :, :, None] - py) ** 2
    U = d2 * jnp.log(d2)  # faithful: no clamp in apply_transform -> NaN on control points
    X = (ax[:, None, None, 0] + ax[:, None, None, 1] * gx + ax[:, None, None, 2] * gy
         + jnp.sum(wx[:, None, None, :] * U, axis=-1))
    Y = (ay[:, None, None, 0] + ay[:, None, None, 1] * gx + ay[:, None, None, 2] * gy
         + jnp.sum(wy[:, None, None, :] * U, axis=-1))
    return jnp.stack([X, Y], axis=-1)


if __name__ == "__main__":
    grid_size = 3
    N = grid_size * grid_size

    def check(theta, out_h, out_w, **kw):
        out = jax.block_until_ready(
            tps_grid_gen(theta, out_h=out_h, out_w=out_w, grid_size=grid_size, **kw))
        ref = jax.block_until_ready(
            tps_grid_gen_ref(theta, out_h=out_h, out_w=out_w, grid_size=grid_size))
        assert out.shape == (theta.shape[0], out_h, out_w, 2), out.shape
        # NaN at pixels coinciding exactly with control points (grid corners) is
        # faithful to the torch reference (0 * log(0)); compare with equal_nan=True.
        assert np.allclose(np.asarray(out), np.asarray(ref),
                           rtol=1e-5, atol=3e-5, equal_nan=True)
        return out

    # Config 1: H*W multiple of 128, whole batch handled in a single grid step.
    theta1 = 0.1 * jax.random.normal(jax.random.PRNGKey(0), (2, 2 * N), dtype=jnp.float32)
    check(theta1, 16, 16)

    # Config 2: H*W not a multiple of 128 (exercises lane padding).
    theta2 = 0.1 * jax.random.normal(jax.random.PRNGKey(1), (3, 2 * N), dtype=jnp.float32)
    check(theta2, 10, 12)

    # Config 3: multiple row blocks (with row padding) and multiple lane blocks.
    theta3 = 0.1 * jax.random.normal(jax.random.PRNGKey(2), (20, 2 * N), dtype=jnp.float32)
    check(theta3, 16, 16, row_block_max=16, lane_block_max=128)

    print("KERNEL_OK")
</pallas_src>

<mosaic_0001>
module attributes {stable_mosaic.version = 11 : i64} {
  func.func @_tps_matmul_kernel(%arg0: i32, %arg1: i32, %arg2: memref<8x16xf32, #tpu.memory_space<vmem>>, %arg3: memref<16x256xf32, #tpu.memory_space<vmem>>, %arg4: memref<8x256xf32, #tpu.memory_space<vmem>>) attributes {dimension_semantics = [#tpu.dimension_semantics<parallel>, #tpu.dimension_semantics<parallel>], iteration_bounds = array<i64: 1, 1>, scalar_prefetch = 0 : i64, scratch_operands = 0 : i64, tpu.core_type = #tpu.core_type<tc>, window_params = [{transform_indices = @transform_0, window_bounds = array<i64: 8, 16>}, {transform_indices = @transform_1, window_bounds = array<i64: 16, 256>}, {transform_indices = @transform_2, window_bounds = array<i64: 8, 256>}]} {
    %c0 = arith.constant 0 : index
    %c0_0 = arith.constant 0 : index
    %0 = vector.load %arg2[%c0, %c0_0] : memref<8x16xf32, #tpu.memory_space<vmem>>, vector<8x16xf32>
    %c0_1 = arith.constant 0 : index
    %c0_2 = arith.constant 0 : index
    %1 = vector.load %arg3[%c0_1, %c0_2] : memref<16x256xf32, #tpu.memory_space<vmem>>, vector<16x256xf32>
    %cst = arith.constant dense<0.000000e+00> : vector<8x256xf32>
    %2 = tpu.matmul %0, %1, %cst {dimension_numbers = #tpu.dot_dimension_numbers<[1], [0], [0], [1], [0, 0, 1, 1], [], []>, precision = #tpu.contract_precision<fp32>} : vector<8x16xf32>, vector<16x256xf32>, vector<8x256xf32> -> vector<8x256xf32>
    %c0_3 = arith.constant 0 : index
    %c0_4 = arith.constant 0 : index
    %3 = vector.load %arg4[%c0_3, %c0_4] : memref<8x256xf32, #tpu.memory_space<vmem>>, vector<8x256xf32>
    tpu.vector_store %arg4[%c0_3, %c0_4], %2 {strides = array<i32>} : memref<8x256xf32, #tpu.memory_space<vmem>>, vector<8x256xf32>,
    return
  }
  func.func @transform_0(%arg0: i32, %arg1: i32) -> (i32, i32) {
    %c0_i32 = arith.constant 0 : i32
    %c0_i32_0 = arith.constant 0 : i32
    return %arg0, %c0_i32 : i32, i32
  }
  func.func @transform_1(%arg0: i32, %arg1: i32) -> (i32, i32) {
    %c0_i32 = arith.constant 0 : i32
    %c0_i32_0 = arith.constant 0 : i32
    return %c0_i32, %arg1 : i32, i32
  }
  func.func @transform_2(%arg0: i32, %arg1: i32) -> (i32, i32) {
    %c0_i32 = arith.constant 0 : i32
    return %arg0, %arg1 : i32, i32
  }
}

</mosaic_0001>

<llo_original>
// kernel: tpu_custom_call.1
$region0: #{tpu_custom_call.1}
  #allocation0 [shape = 'u32[]', space=smem, size = 0x4, offset = 0x4, fixed_abs, tag = 'smem constant byte address 0x4 - core index']
  #allocation1 [shape = 'u32[144,128]{1,0:T(1,128)}', space=vmem, size = 0x12000, scoped, tag = 'internal scratch']
  %s0 = inlined_call_operand.hbm [shape: f32[8,16], index: 0, kind: input, shape index: {}]
  %s1 = inlined_call_operand.hbm [shape: f32[16,256], index: 1, kind: input, shape index: {}]
  %s2 = inlined_call_operand.hbm [shape: f32[8,256], index: 2, kind: output, shape index: {}]
  %s3 = sld [smem:[#allocation0]]
  $region26: #{tpu_custom_call.1} parent=0
    _
  %s5 = ssub.s32 1, %s3
  %s6 = scalar_select 0, %s5, %s3
  $region1: #{tpu_custom_call.1} parent=0
    #allocation2 [shape = 'u8[4096]{0}', space=vmem, size = 0x1000, scoped, tag = 'input window, operand 0, single buffered']
    #allocation3 [shape = 's32[1]{0}', space=sflag, size = 0x4, scoped, tag = 'scoped memory for tpu_custom_call.1']
    #allocation4 [shape = 's32[1]{0}', space=sflag, size = 0x4, scoped, tag = 'scoped memory for tpu_custom_call.1']
    #allocation5 [shape = 'u8[16384]{0}', space=vmem, size = 0x4000, scoped, tag = 'input window, operand 1, single buffered']
    #allocation6 [shape = 's32[1]{0}', space=sflag, size = 0x4, scoped, tag = 'scoped memory for tpu_custom_call.1']
    #allocation7 [shape = 'u8[8192]{0}', space=vmem, size = 0x2000, scoped, tag = 'output window, operand 0, single buffered']
    %7 = vsyncpa [#allocation3], 0
    %8 = vsyncpa [#allocation6], 0
    %9 = vsyncpa [#allocation4], 0
    // Predicated region
    $region2: #{tpu_custom_call.1} parent=1 // pred_check
      _
    $region3: #{tpu_custom_call.1} parent=1 // pred_check_branch
      %11 = sbr.rel (0) target = $region5
    $region4: #{tpu_custom_call.1} parent=1 // pred_region
      %s13 = ssub.s32 128, 128
      %14 = vsyncadd [#allocation3], %s13
      %s16 = sshll.u32 [#allocation2], 4
      %s17 = int_to_ptr.vmem [resolvable:$true] %s16
      %19 = dma.hbm_to_vmem [thread:$0]  %s0, 128, %s17, [#allocation3]
    $region5: #{tpu_custom_call.1} parent=1 // pred_fallthru
      _
    // Predicated region
    $region6: #{tpu_custom_call.1} parent=1 // pred_check
      _
    $region7: #{tpu_custom_call.1} parent=1 // pred_check_branch
      %21 = sbr.rel (0) target = $region9
    $region8: #{tpu_custom_call.1} parent=1 // pred_region
      %s23 = ssub.s32 512, 512
      %24 = vsyncadd [#allocation6], %s23
      %s25 = sshll.u32 [#allocation5], 4
      %s26 = int_to_ptr.vmem [resolvable:$true] %s25
      %31 = dma.hbm_to_vmem [thread:$0]  %s1, 512, %s26, [#allocation6], 256, 256, 16
    $region9: #{tpu_custom_call.1} parent=1 // pred_fallthru
      _
    // Predicated region
    $region10: #{tpu_custom_call.1} parent=1 // pred_check
      _
    $region11: #{tpu_custom_call.1} parent=1 // pred_check_branch
      %33 = sbr.rel (0) target = $region13
    $region12: #{tpu_custom_call.1} parent=1 // pred_region
      %34 = dma.done [#allocation3], 128
    $region13: #{tpu_custom_call.1} parent=1 // pred_fallthru
      _
    // Predicated region
    $region14: #{tpu_custom_call.1} parent=1 // pred_check
      _
    $region15: #{tpu_custom_call.1} parent=1 // pred_check_branch
      %36 = sbr.rel (0) target = $region17
    $region16: #{tpu_custom_call.1} parent=1 // pred_region
      %37 = dma.done [#allocation6], 512
    $region17: #{tpu_custom_call.1} parent=1 // pred_fallthru
      _
    %v38 = vld [vmem:[#allocation2] sm:$0xff]
    %v39 = vld [vmem:[#allocation5] sm:$0xff]
    %v40 = vld [vmem:[#allocation5 + $0x8] sm:$0xff]
    %v41 = vld [vmem:[#allocation5 + $0x10] sm:$0xff]
    %v42 = vld [vmem:[#allocation5 + $0x18] sm:$0xff]
    %vm43 = vcmask 130048
    %v45 = vsel %vm43, %v38, 0
    %v47 = vand.u32 %v40, 4294901760
    %48 = vmatprep.subr.mxu0 %v47
    %v49 = vand.u32 %v39, 4294901760
    %50 = vmatpush1.msra.mxu0 %v49
    %v51 = vand.u32 %v42, 4294901760
    %52 = vmatprep.subr.mxu0 %v51
    %v53 = vand.u32 %v41, 4294901760
    %54 = vmatpush1.msra.mxu0 %v53
    %55 = vmatprep.subr.mxu0 0.0
    %56 = vmatpush1.msra.mxu0 0.0
    %57 = vmatprep.subr.mxu0 0.0
    %58 = vmatpush1.msra.mxu0 0.0
    %59 = vmatprep.subr.mxu0 0.0
    %60 = vmatpush1.msra.mxu0 0.0
    %61 = vmatprep.subr.mxu0 0.0
    %62 = vmatpush1.msra.mxu0 0.0
    %63 = vmatprep.subr.mxu0 0.0
    %64 = vmatpush1.msra.mxu0 0.0
    %65 = vmatprep.subr.mxu0 0.0
    %66 = vmatpush1.msra.mxu0 0.0
    %67 = vmatprep.subr.mxu0 0.0
    %68 = vmatpush1.msra.mxu0 0.0
    %69 = vmatprep.subr.mxu0 0.0
    %70 = vmatpush1.msra.mxu0 0.0
    %71 = vmatprep.subr.mxu0 0.0
    %72 = vmatpush1.msra.mxu0 0.0
    %73 = vmatprep.subr.mxu0 0.0
    %74 = vmatpush1.msra.mxu0 0.0
    %75 = vmatprep.subr.mxu0 0.0
    %76 = vmatpush1.msra.mxu0 0.0
    %77 = vmatprep.subr.mxu0 0.0
    %78 = vmatpush1.msra.mxu0 0.0
    %79 = vmatprep.subr.mxu0 0.0
    %80 = vmatpush1.msra.mxu0 0.0
    %81 = vmatprep.subr.mxu0 0.0
    %82 = vmatpush1.msra.mxu0 0.0
    %83 = vmatprep.subr.mxu0 0.0
    %84 = vmatpush1.msra.mxu0 0.0
    %85 = vmatprep.subr.mxu0 0.0
    %86 = vmatpush1.msra.mxu0 0.0
    %87 = vmatprep.subr.mxu0 0.0
    %88 = vmatpush1.msra.mxu0 0.0
    %89 = vmatprep.subr.mxu0 0.0
    %90 = vmatpush1.msra.mxu0 0.0
    %91 = vmatprep.subr.mxu0 0.0
    %92 = vmatpush1.msra.mxu0 0.0
    %93 = vmatprep.subr.mxu0 0.0
    %94 = vmatpush1.msra.mxu0 0.0
    %95 = vmatprep.subr.mxu0 0.0
    %96 = vmatpush1.msra.mxu0 0.0
    %97 = vmatprep.subr.mxu0 0.0
    %98 = vmatpush1.msra.mxu0 0.0
    %99 = vmatprep.subr.mxu0 0.0
    %100 = vmatpush1.msra.mxu0 0.0
    %101 = vmatprep.subr.mxu0 0.0
    %102 = vmatpush1.msra.mxu0 0.0
    %103 = vmatprep.subr.mxu0 0.0
    %104 = vmatpush1.msra.mxu0 0.0
    %105 = vmatprep.subr.mxu0 0.0
    %106 = vmatpush1.msra.mxu0 0.0
    %107 = vmatprep.subr.mxu0 0.0
    %108 = vmatpush1.msra.mxu0 0.0
    %109 = vmatprep.subr.mxu0 0.0
    %110 = vmatpush1.msra.mxu0 0.0
    %111 = vmatprep.subr.mxu0 0.0
    %112 = vmatpush1.msra.mxu0 0.0
    %113 = vmatprep.subr.mxu0 0.0
    %114 = vmatpush1.msra.mxu0 0.0
    %115 = vmatprep.mubr.f32.mxu0 0.0
    %v116 = vand.u32 %v45, 4294901760
    %v117 = vsub.f32 %v45, %v116
    %v118 = vand.u32 %v117, 4294901760
    %v119 = vsub.f32 %v117, %v118
    %v120 = vand.u32 %v119, 4294901760
    %121 = vmatmul.mubr.f32.gmra.mrb[0].mxu0 %v120
    %v122 = vpop.f32.mrb[0].mxu0
    %v123 = vadd.f32 0.0, %v122
    %v124 = vpop.f32.mrb[0].mxu0
    %v125 = vadd.f32 0.0, %v124
    %126 = vdwg.mxu0
    %v127 = vand.u32 %v40, 4294901760
    %v128 = vsub.f32 %v40, %v127
    %v129 = vand.u32 %v128, 4294901760
    %v130 = vsub.f32 %v128, %v129
    %v131 = vand.u32 %v130, 4294901760
    %132 = vmatprep.subr.mxu0 %v131
    %v133 = vand.u32 %v39, 4294901760
    %v134 = vsub.f32 %v39, %v133
    %v135 = vand.u32 %v134, 4294901760
    %v136 = vsub.f32 %v134, %v135
    %v137 = vand.u32 %v136, 4294901760
    %138 = vmatpush1.msra.mxu0 %v137
    %v139 = vand.u32 %v42, 4294901760
    %v140 = vsub.f32 %v42, %v139
    %v141 = vand.u32 %v140, 4294901760
    %v142 = vsub.f32 %v140, %v141
    %v143 = vand.u32 %v142, 4294901760
    %144 = vmatprep.subr.mxu0 %v143
    %v145 = vand.u32 %v41, 4294901760
    %v146 = vsub.f32 %v41, %v145
    %v147 = vand.u32 %v146, 4294901760
    %v148 = vsub.f32 %v146, %v147
    %v149 = vand.u32 %v148, 4294901760
    %150 = vmatpush1.msra.mxu0 %v149
    %151 = vmatprep.subr.mxu0 0.0
    %152 = vmatpush1.msra.mxu0 0.0
    %153 = vmatprep.subr.mxu0 0.0
    %154 = vmatpush1.msra.mxu0 0.0
    %155 = vmatprep.subr.mxu0 0.0
    %156 = vmatpush1.msra.mxu0 0.0
    %157 = vmatprep.subr.mxu0 0.0
    %158 = vmatpush1.msra.mxu0 0.0
    %159 = vmatprep.subr.mxu0 0.0
    %160 = vmatpush1.msra.mxu0 0.0
    %161 = vmatprep.subr.mxu0 0.0
    %162 = vmatpush1.msra.mxu0 0.0
    %163 = vmatprep.subr.mxu0 0.0
    %164 = vmatpush1.msra.mxu0 0.0
    %165 = vmatprep.subr.mxu0 0.0
    %166 = vmatpush1.msra.mxu0 0.0
    %167 = vmatprep.subr.mxu0 0.0
    %168 = vmatpush1.msra.mxu0 0.0
    %169 = vmatprep.subr.mxu0 0.0
    %170 = vmatpush1.msra.mxu0 0.0
    %171 = vmatprep.subr.mxu0 0.0
    %172 = vmatpush1.msra.mxu0 0.0
    %173 = vmatprep.subr.mxu0 0.0
    %174 = vmatpush1.msra.mxu0 0.0
    %175 = vmatprep.subr.mxu0 0.0
    %176 = vmatpush1.msra.mxu0 0.0
    %177 = vmatprep.subr.mxu0 0.0
    %178 = vmatpush1.msra.mxu0 0.0
    %179 = vmatprep.subr.mxu0 0.0
    %180 = vmatpush1.msra.mxu0 0.0
    %181 = vmatprep.subr.mxu0 0.0
    %182 = vmatpush1.msra.mxu0 0.0
    %183 = vmatprep.subr.mxu0 0.0
    %184 = vmatpush1.msra.mxu0 0.0
    %185 = vmatprep.subr.mxu0 0.0
    %186 = vmatpush1.msra.mxu0 0.0
    %187 = vmatprep.subr.mxu0 0.0
    %188 = vmatpush1.msra.mxu0 0.0
    %189 = vmatprep.subr.mxu0 0.0
    %190 = vmatpush1.msra.mxu0 0.0
    %191 = vmatprep.subr.mxu0 0.0
    %192 = vmatpush1.msra.mxu0 0.0
    %193 = vmatprep.subr.mxu0 0.0
    %194 = vmatpush1.msra.mxu0 0.0
    %195 = vmatprep.subr.mxu0 0.0
    %196 = vmatpush1.msra.mxu0 0.0
    %197 = vmatprep.subr.mxu0 0.0
    %198 = vmatpush1.msra.mxu0 0.0
    %199 = vmatprep.subr.mxu0 0.0
    %200 = vmatpush1.msra.mxu0 0.0
    %201 = vmatprep.subr.mxu0 0.0
    %202 = vmatpush1.msra.mxu0 0.0
    %203 = vmatprep.subr.mxu0 0.0
    %204 = vmatpush1.msra.mxu0 0.0
    %205 = vmatprep.subr.mxu0 0.0
    %206 = vmatpush1.msra.mxu0 0.0
    %207 = vmatprep.subr.mxu0 0.0
    %208 = vmatpush1.msra.mxu0 0.0
    %209 = vmatprep.subr.mxu0 0.0
    %210 = vmatpush1.msra.mxu0 0.0
    %211 = vmatprep.mubr.f32.mxu0 0.0
    %v212 = vand.u32 %v45, 4294901760
    %213 = vmatmul.mubr.f32.gmra.mrb[0].mxu0 %v212
    %v214 = vpop.f32.mrb[0].mxu0
    %v215 = vadd.f32 %v123, %v214
    %v216 = vpop.f32.mrb[0].mxu0
    %v217 = vadd.f32 %v125, %v216
    %218 = vdwg.mxu0
    %v219 = vand.u32 %v40, 4294901760
    %v220 = vsub.f32 %v40, %v219
    %221 = vmatprep.subr.mxu0 %v220
    %v222 = vand.u32 %v39, 4294901760
    %v223 = vsub.f32 %v39, %v222
    %224 = vmatpush1.msra.mxu0 %v223
    %v225 = vand.u32 %v42, 4294901760
    %v226 = vsub.f32 %v42, %v225
    %227 = vmatprep.subr.mxu0 %v226
    %v228 = vand.u32 %v41, 4294901760
    %v229 = vsub.f32 %v41, %v228
    %230 = vmatpush1.msra.mxu0 %v229
    %231 = vmatprep.subr.mxu0 0.0
    %232 = vmatpush1.msra.mxu0 0.0
    %233 = vmatprep.subr.mxu0 0.0
    %234 = vmatpush1.msra.mxu0 0.0
    %235 = vmatprep.subr.mxu0 0.0
    %236 = vmatpush1.msra.mxu0 0.0
    %237 = vmatprep.subr.mxu0 0.0
    %238 = vmatpush1.msra.mxu0 0.0
    %239 = vmatprep.subr.mxu0 0.0
    %240 = vmatpush1.msra.mxu0 0.0
    %241 = vmatprep.subr.mxu0 0.0
    %242 = vmatpush1.msra.mxu0 0.0
    %243 = vmatprep.subr.mxu0 0.0
    %244 = vmatpush1.msra.mxu0 0.0
    %245 = vmatprep.subr.mxu0 0.0
    %246 = vmatpush1.msra.mxu0 0.0
    %247 = vmatprep.subr.mxu0 0.0
    %248 = vmatpush1.msra.mxu0 0.0
    %249 = vmatprep.subr.mxu0 0.0
    %250 = vmatpush1.msra.mxu0 0.0
    %251 = vmatprep.subr.mxu0 0.0
    %252 = vmatpush1.msra.mxu0 0.0
    %253 = vmatprep.subr.mxu0 0.0
    %254 = vmatpush1.msra.mxu0 0.0
    %255 = vmatprep.subr.mxu0 0.0
    %256 = vmatpush1.msra.mxu0 0.0
    %257 = vmatprep.subr.mxu0 0.0
    %258 = vmatpush1.msra.mxu0 0.0
    %259 = vmatprep.subr.mxu0 0.0
    %260 = vmatpush1.msra.mxu0 0.0
    %261 = vmatprep.subr.mxu0 0.0
    %262 = vmatpush1.msra.mxu0 0.0
    %263 = vmatprep.subr.mxu0 0.0
    %264 = vmatpush1.msra.mxu0 0.0
    %265 = vmatprep.subr.mxu0 0.0
    %266 = vmatpush1.msra.mxu0 0.0
    %267 = vmatprep.subr.mxu0 0.0
    %268 = vmatpush1.msra.mxu0 0.0
    %269 = vmatprep.subr.mxu0 0.0
    %270 = vmatpush1.msra.mxu0 0.0
    %271 = vmatprep.subr.mxu0 0.0
    %272 = vmatpush1.msra.mxu0 0.0
    %273 = vmatprep.subr.mxu0 0.0
    %274 = vmatpush1.msra.mxu0 0.0
    %275 = vmatprep.subr.mxu0 0.0
    %276 = vmatpush1.msra.mxu0 0.0
    %277 = vmatprep.subr.mxu0 0.0
    %278 = vmatpush1.msra.mxu0 0.0
    %279 = vmatprep.subr.mxu0 0.0
    %280 = vmatpush1.msra.mxu0 0.0
    %281 = vmatprep.subr.mxu0 0.0
    %282 = vmatpush1.msra.mxu0 0.0
    %283 = vmatprep.subr.mxu0 0.0
    %284 = vmatpush1.msra.mxu0 0.0
    %285 = vmatprep.subr.mxu0 0.0
    %286 = vmatpush1.msra.mxu0 0.0
    %287 = vmatprep.subr.mxu0 0.0
    %288 = vmatpush1.msra.mxu0 0.0
    %289 = vmatprep.subr.mxu0 0.0
    %290 = vmatpush1.msra.mxu0 0.0
    %291 = vmatprep.mubr.f32.mxu0 0.0
    %v292 = vand.u32 %v45, 4294901760
    %v293 = vsub.f32 %v45, %v292
    %294 = vmatmul.mubr.f32.gmra.mrb[0].mxu0 %v293
    %v295 = vpop.f32.mrb[0].mxu0
    %v296 = vadd.f32 %v215, %v295
    %v297 = vpop.f32.mrb[0].mxu0
    %v298 = vadd.f32 %v217, %v297
    %299 = vdwg.mxu0
    %v300 = vand.u32 %v40, 4294901760
    %301 = vmatprep.subr.mxu0 %v300
    %v302 = vand.u32 %v39, 4294901760
    %303 = vmatpush1.msra.mxu0 %v302
    %v304 = vand.u32 %v42, 4294901760
    %305 = vmatprep.subr.mxu0 %v304
    %v306 = vand.u32 %v41, 4294901760
    %307 = vmatpush1.msra.mxu0 %v306
    %308 = vmatprep.subr.mxu0 0.0
    %309 = vmatpush1.msra.mxu0 0.0
    %310 = vmatprep.subr.mxu0 0.0
    %311 = vmatpush1.msra.mxu0 0.0
    %312 = vmatprep.subr.mxu0 0.0
    %313 = vmatpush1.msra.mxu0 0.0
    %314 = vmatprep.subr.mxu0 0.0
    %315 = vmatpush1.msra.mxu0 0.0
    %316 = vmatprep.subr.mxu0 0.0
    %317 = vmatpush1.msra.mxu0 0.0
    %318 = vmatprep.subr.mxu0 0.0
    %319 = vmatpush1.msra.mxu0 0.0
    %320 = vmatprep.subr.mxu0 0.0
    %321 = vmatpush1.msra.mxu0 0.0
    %322 = vmatprep.subr.mxu0 0.0
    %323 = vmatpush1.msra.mxu0 0.0
    %324 = vmatprep.subr.mxu0 0.0
    %325 = vmatpush1.msra.mxu0 0.0
    %326 = vmatprep.subr.mxu0 0.0
    %327 = vmatpush1.msra.mxu0 0.0
    %328 = vmatprep.subr.mxu0 0.0
    %329 = vmatpush1.msra.mxu0 0.0
    %330 = vmatprep.subr.mxu0 0.0
    %331 = vmatpush1.msra.mxu0 0.0
    %332 = vmatprep.subr.mxu0 0.0
    %333 = vmatpush1.msra.mxu0 0.0
    %334 = vmatprep.subr.mxu0 0.0
    %335 = vmatpush1.msra.mxu0 0.0
    %336 = vmatprep.subr.mxu0 0.0
    %337 = vmatpush1.msra.mxu0 0.0
    %338 = vmatprep.subr.mxu0 0.0
    %339 = vmatpush1.msra.mxu0 0.0
    %340 = vmatprep.subr.mxu0 0.0
    %341 = vmatpush1.msra.mxu0 0.0
    %342 = vmatprep.subr.mxu0 0.0
    %343 = vmatpush1.msra.mxu0 0.0
    %344 = vmatprep.subr.mxu0 0.0
    %345 = vmatpush1.msra.mxu0 0.0
    %346 = vmatprep.subr.mxu0 0.0
    %347 = vmatpush1.msra.mxu0 0.0
    %348 = vmatprep.subr.mxu0 0.0
    %349 = vmatpush1.msra.mxu0 0.0
    %350 = vmatprep.subr.mxu0 0.0
    %351 = vmatpush1.msra.mxu0 0.0
    %352 = vmatprep.subr.mxu0 0.0
    %353 = vmatpush1.msra.mxu0 0.0
    %354 = vmatprep.subr.mxu0 0.0
    %355 = vmatpush1.msra.mxu0 0.0
    %356 = vmatprep.subr.mxu0 0.0
    %357 = vmatpush1.msra.mxu0 0.0
    %358 = vmatprep.subr.mxu0 0.0
    %359 = vmatpush1.msra.mxu0 0.0
    %360 = vmatprep.subr.mxu0 0.0
    %361 = vmatpush1.msra.mxu0 0.0
    %362 = vmatprep.subr.mxu0 0.0
    %363 = vmatpush1.msra.mxu0 0.0
    %364 = vmatprep.subr.mxu0 0.0
    %365 = vmatpush1.msra.mxu0 0.0
    %366 = vmatprep.subr.mxu0 0.0
    %367 = vmatpush1.msra.mxu0 0.0
    %368 = vmatprep.mubr.f32.mxu0 0.0
    %v369 = vand.u32 %v45, 4294901760
    %v370 = vsub.f32 %v45, %v369
    %v371 = vand.u32 %v370, 4294901760
    %372 = vmatmul.mubr.f32.gmra.mrb[0].mxu0 %v371
    %v373 = vpop.f32.mrb[0].mxu0
    %v374 = vadd.f32 %v296, %v373
    %v375 = vpop.f32.mrb[0].mxu0
    %v376 = vadd.f32 %v298, %v375
    %377 = vdwg.mxu0
    %v378 = vand.u32 %v40, 4294901760
    %v379 = vsub.f32 %v40, %v378
    %v380 = vand.u32 %v379, 4294901760
    %381 = vmatprep.subr.mxu0 %v380
    %v382 = vand.u32 %v39, 4294901760
    %v383 = vsub.f32 %v39, %v382
    %v384 = vand.u32 %v383, 4294901760
    %385 = vmatpush1.msra.mxu0 %v384
    %v386 = vand.u32 %v42, 4294901760
    %v387 = vsub.f32 %v42, %v386
    %v388 = vand.u32 %v387, 4294901760
    %389 = vmatprep.subr.mxu0 %v388
    %v390 = vand.u32 %v41, 4294901760
    %v391 = vsub.f32 %v41, %v390
    %v392 = vand.u32 %v391, 4294901760
    %393 = vmatpush1.msra.mxu0 %v392
    %394 = vmatprep.subr.mxu0 0.0
    %395 = vmatpush1.msra.mxu0 0.0
    %396 = vmatprep.subr.mxu0 0.0
    %397 = vmatpush1.msra.mxu0 0.0
    %398 = vmatprep.subr.mxu0 0.0
    %399 = vmatpush1.msra.mxu0 0.0
    %400 = vmatprep.subr.mxu0 0.0
    %401 = vmatpush1.msra.mxu0 0.0
    %402 = vmatprep.subr.mxu0 0.0
    %403 = vmatpush1.msra.mxu0 0.0
    %404 = vmatprep.subr.mxu0 0.0
    %405 = vmatpush1.msra.mxu0 0.0
    %406 = vmatprep.subr.mxu0 0.0
    %407 = vmatpush1.msra.mxu0 0.0
    %408 = vmatprep.subr.mxu0 0.0
    %409 = vmatpush1.msra.mxu0 0.0
    %410 = vmatprep.subr.mxu0 0.0
    %411 = vmatpush1.msra.mxu0 0.0
    %412 = vmatprep.subr.mxu0 0.0
    %413 = vmatpush1.msra.mxu0 0.0
    %414 = vmatprep.subr.mxu0 0.0
    %415 = vmatpush1.msra.mxu0 0.0
    %416 = vmatprep.subr.mxu0 0.0
    %417 = vmatpush1.msra.mxu0 0.0
    %418 = vmatprep.subr.mxu0 0.0
    %419 = vmatpush1.msra.mxu0 0.0
    %420 = vmatprep.subr.mxu0 0.0
    %421 = vmatpush1.msra.mxu0 0.0
    %422 = vmatprep.subr.mxu0 0.0
    %423 = vmatpush1.msra.mxu0 0.0
    %424 = vmatprep.subr.mxu0 0.0
    %425 = vmatpush1.msra.mxu0 0.0
    %426 = vmatprep.subr.mxu0 0.0
    %427 = vmatpush1.msra.mxu0 0.0
    %428 = vmatprep.subr.mxu0 0.0
    %429 = vmatpush1.msra.mxu0 0.0
    %430 = vmatprep.subr.mxu0 0.0
    %431 = vmatpush1.msra.mxu0 0.0
    %432 = vmatprep.subr.mxu0 0.0
    %433 = vmatpush1.msra.mxu0 0.0
    %434 = vmatprep.subr.mxu0 0.0
    %435 = vmatpush1.msra.mxu0 0.0
    %436 = vmatprep.subr.mxu0 0.0
    %437 = vmatpush1.msra.mxu0 0.0
    %438 = vmatprep.subr.mxu0 0.0
    %439 = vmatpush1.msra.mxu0 0.0
    %440 = vmatprep.subr.mxu0 0.0
    %441 = vmatpush1.msra.mxu0 0.0
    %442 = vmatprep.subr.mxu0 0.0
    %443 = vmatpush1.msra.mxu0 0.0
    %444 = vmatprep.subr.mxu0 0.0
    %445 = vmatpush1.msra.mxu0 0.0
    %446 = vmatprep.subr.mxu0 0.0
    %447 = vmatpush1.msra.mxu0 0.0
    %448 = vmatprep.subr.mxu0 0.0
    %449 = vmatpush1.msra.mxu0 0.0
    %450 = vmatprep.subr.mxu0 0.0
    %451 = vmatpush1.msra.mxu0 0.0
    %452 = vmatprep.subr.mxu0 0.0
    %453 = vmatpush1.msra.mxu0 0.0
    %454 = vmatprep.mubr.f32.mxu0 0.0
    %v455 = vand.u32 %v45, 4294901760
    %456 = vmatmul.mubr.f32.gmra.mrb[0].mxu0 %v455
    %v457 = vpop.f32.mrb[0].mxu0
    %v458 = vadd.f32 %v374, %v457
    %v459 = vpop.f32.mrb[0].mxu0
    %v460 = vadd.f32 %v376, %v459
    %461 = vdwg.mxu0
    %v462 = vand.u32 %v40, 4294901760
    %463 = vmatprep.subr.mxu0 %v462
    %v464 = vand.u32 %v39, 4294901760
    %465 = vmatpush1.msra.mxu0 %v464
    %v466 = vand.u32 %v42, 4294901760
    %467 = vmatprep.subr.mxu0 %v466
    %v468 = vand.u32 %v41, 4294901760
    %469 = vmatpush1.msra.mxu0 %v468
    %470 = vmatprep.subr.mxu0 0.0
    %471 = vmatpush1.msra.mxu0 0.0
    %472 = vmatprep.subr.mxu0 0.0
    %473 = vmatpush1.msra.mxu0 0.0
    %474 = vmatprep.subr.mxu0 0.0
    %475 = vmatpush1.msra.mxu0 0.0
    %476 = vmatprep.subr.mxu0 0.0
    %477 = vmatpush1.msra.mxu0 0.0
    %478 = vmatprep.subr.mxu0 0.0
    %479 = vmatpush1.msra.mxu0 0.0
    %480 = vmatprep.subr.mxu0 0.0
    %481 = vmatpush1.msra.mxu0 0.0
    %482 = vmatprep.subr.mxu0 0.0
    %483 = vmatpush1.msra.mxu0 0.0
    %484 = vmatprep.subr.mxu0 0.0
    %485 = vmatpush1.msra.mxu0 0.0
    %486 = vmatprep.subr.mxu0 0.0
    %487 = vmatpush1.msra.mxu0 0.0
    %488 = vmatprep.subr.mxu0 0.0
    %489 = vmatpush1.msra.mxu0 0.0
    %490 = vmatprep.subr.mxu0 0.0
    %491 = vmatpush1.msra.mxu0 0.0
    %492 = vmatprep.subr.mxu0 0.0
    %493 = vmatpush1.msra.mxu0 0.0
    %494 = vmatprep.subr.mxu0 0.0
    %495 = vmatpush1.msra.mxu0 0.0
    %496 = vmatprep.subr.mxu0 0.0
    %497 = vmatpush1.msra.mxu0 0.0
    %498 = vmatprep.subr.mxu0 0.0
    %499 = vmatpush1.msra.mxu0 0.0
    %500 = vmatprep.subr.mxu0 0.0
    %501 = vmatpush1.msra.mxu0 0.0
    %502 = vmatprep.subr.mxu0 0.0
    %503 = vmatpush1.msra.mxu0 0.0
    %504 = vmatprep.subr.mxu0 0.0
    %505 = vmatpush1.msra.mxu0 0.0
    %506 = vmatprep.subr.mxu0 0.0
    %507 = vmatpush1.msra.mxu0 0.0
    %508 = vmatprep.subr.mxu0 0.0
    %509 = vmatpush1.msra.mxu0 0.0
    %510 = vmatprep.subr.mxu0 0.0
    %511 = vmatpush1.msra.mxu0 0.0
    %512 = vmatprep.subr.mxu0 0.0
    %513 = vmatpush1.msra.mxu0 0.0
    %514 = vmatprep.subr.mxu0 0.0
    %515 = vmatpush1.msra.mxu0 0.0
    %516 = vmatprep.subr.mxu0 0.0
    %517 = vmatpush1.msra.mxu0 0.0
    %518 = vmatprep.subr.mxu0 0.0
    %519 = vmatpush1.msra.mxu0 0.0
    %520 = vmatprep.subr.mxu0 0.0
    %521 = vmatpush1.msra.mxu0 0.0
    %522 = vmatprep.subr.mxu0 0.0
    %523 = vmatpush1.msra.mxu0 0.0
    %524 = vmatprep.subr.mxu0 0.0
    %525 = vmatpush1.msra.mxu0 0.0
    %526 = vmatprep.subr.mxu0 0.0
    %527 = vmatpush1.msra.mxu0 0.0
    %528 = vmatprep.subr.mxu0 0.0
    %529 = vmatpush1.msra.mxu0 0.0
    %530 = vmatprep.mubr.f32.mxu0 0.0
    %v531 = vand.u32 %v45, 4294901760
    %532 = vmatmul.mubr.f32.gmra.mrb[0].mxu0 %v531
    %v533 = vpop.f32.mrb[0].mxu0
    %v534 = vadd.f32 %v458, %v533
    %v535 = vpop.f32.mrb[0].mxu0
    %v536 = vadd.f32 %v460, %v535
    %537 = vdwg.mxu0
    %538 = vst [vmem:[#allocation7] sm:$0xff] %v534
    %539 = vst [vmem:[#allocation7 + $0x8] sm:$0xff] %v536
    // Predicated region
    $region18: #{tpu_custom_call.1} parent=1 // pred_check
      _
    $region19: #{tpu_custom_call.1} parent=1 // pred_check_branch
      %541 = sbr.rel (0) target = $region21
    $region20: #{tpu_custom_call.1} parent=1 // pred_region
      %s543 = ssub.s32 256, 256
      %544 = vsyncadd [#allocation4], %s543
      %s546 = sshll.u32 [#allocation7], 4
      %s547 = int_to_ptr.vmem [resolvable:$true] %s546
      %549 = dma.vmem_to_hbm [thread:$0]  %s547, 256, %s2, [#allocation4]
    $region21: #{tpu_custom_call.1} parent=1 // pred_fallthru
      _
    // Predicated region
    $region22: #{tpu_custom_call.1} parent=1 // pred_check
      _
    $region23: #{tpu_custom_call.1} parent=1 // pred_check_branch
      %551 = sbr.rel (0) target = $region25
    $region24: #{tpu_custom_call.1} parent=1 // pred_region
      %552 = dma.done [#allocation4], 256
    $region25: #{tpu_custom_call.1} parent=1 // pred_fallthru
      _
    %553 = vsyncpa [#allocation3], 1
    %554 = vsyncpa [#allocation6], 1
    %555 = vsyncpa [#allocation4], 1

</llo_original>
